<compile_context>
chip_gen: v5e
topology: v5e:2x2
jax: 0.10.0
libtpu: 0.0.40
codegen_flags: <defaults>
</compile_context>

<pallas_src>
import functools

import jax
import jax.numpy as jnp
from jax import lax
from jax.experimental import pallas as pl
from jax.experimental.pallas import tpu as pltpu

ALPHA = 1.0
GAMMA = 2.0
_BCE_LOG_CLAMP = -100.0  # PyTorch clamps log terms of BCE at -100


def _tpu_generation():
    try:
        kind = jax.devices()[0].device_kind.lower()
    except Exception:
        return "unknown"
    if "v7" in kind or "7x" in kind:
        return "v7x"
    if "v6" in kind:
        return "v6e"
    if "v5" in kind:
        return "v5e"
    return "unknown"


# generation -> (target_block_bytes, vmem_limit_bytes, n_cores)
_GEN_CONFIG = {
    "v5e": (3 * 1024 * 1024, 48 * 1024 * 1024, 1),
    "v6e": (6 * 1024 * 1024, 64 * 1024 * 1024, 1),
    "v7x": (4 * 1024 * 1024, 48 * 1024 * 1024, 2),
    "unknown": (2 * 1024 * 1024, None, 1),
}


def _focal_loss_kernel(x_ref, t_ref, acc_ref, *, m_rows, block_rows,
                       blocks_per_core, acc_rows, mask_from_block,
                       binary_targets):
    c = pl.program_id(0)   # core / parallel index
    i = pl.program_id(1)   # reduction (arbitrary) index

    @pl.when(i == 0)
    def _():
        acc_ref[...] = jnp.zeros_like(acc_ref)

    p = x_ref[...].astype(jnp.float32)
    t = t_ref[...].astype(jnp.float32)

    if binary_targets:
        # Fast path (targets in {0,1}): 1 log per element instead of 2 logs + 1 exp.
        # Differs from exp(clamped BCE) only when log(pt) < -100 (pt < ~3.7e-44,
        # f32-subnormal); the resulting loss values are bit-identical in practice.
        pt = jnp.where(t > 0.5, p, 1.0 - p)
        bce = -jnp.maximum(jnp.log(pt), _BCE_LOG_CLAMP)
    else:
        # Faithful to F.binary_cross_entropy(reduce=False) with PyTorch log clamping.
        log_p = jnp.maximum(jnp.log(p), _BCE_LOG_CLAMP)
        log_1mp = jnp.maximum(jnp.log(1.0 - p), _BCE_LOG_CLAMP)
        bce = -(t * log_p + (1.0 - t) * log_1mp)
        pt = jnp.exp(-bce)

    q = 1.0 - pt
    fl = q * q * bce  # alpha == 1, gamma == 2 (explicit square, no float pow)
    lanes = fl.shape[-1]

    if mask_from_block is None:
        # VPU-only accumulation into the vreg-shaped partial-sum output.
        acc_ref[...] += fl.reshape(-1, acc_rows, lanes).sum(axis=0)
    else:
        block_idx = c * blocks_per_core + i

        @pl.when(block_idx < mask_from_block)
        def _():
            acc_ref[...] += fl.reshape(-1, acc_rows, lanes).sum(axis=0)

        @pl.when(block_idx >= mask_from_block)
        def _():
            # Ragged last block and/or dead blocks of the parallel split:
            # zero contributions from rows beyond the true row count.
            row_start = block_idx * block_rows
            row_ids = row_start + lax.broadcasted_iota(jnp.int32, fl.shape, 0)
            fl_m = jnp.where(row_ids < m_rows, fl, 0.0)
            acc_ref[...] += fl_m.reshape(-1, acc_rows, lanes).sum(axis=0)


def focal_loss(inputs, targets, *, n_cores=None, target_block_bytes=None,
               vmem_limit_bytes=None, assume_binary_targets=None):
    """Mean focal loss (alpha=1, gamma=2, logits=False, reduce=True).

    Inputs are probabilities in (0, 1); targets in [0, 1].  Inputs may be
    bf16 and targets bool/int8 to cut HBM traffic (kernel upcasts to f32).
    """
    assert inputs.shape == targets.shape
    total = inputs.size
    assert total % 128 == 0, "total element count must be a multiple of 128"

    gen = _tpu_generation()
    g_blk, g_vmem, g_cores = _GEN_CONFIG[gen]
    if target_block_bytes is None:
        target_block_bytes = g_blk
    if vmem_limit_bytes is None:
        vmem_limit_bytes = g_vmem
    if n_cores is None:
        n_cores = g_cores

    if assume_binary_targets is None:
        tdt = jnp.dtype(targets.dtype)
        assume_binary_targets = bool(tdt == jnp.bool_ or
                                     jnp.issubdtype(tdt, jnp.integer))

    # Lane-dense slab width: largest multiple of 128 (<=1024) dividing total,
    # preferring m >= 8 rows.
    lanes = None
    for cand in (1024, 512, 256, 128):
        if total % cand == 0 and total // cand >= 8:
            lanes = cand
            break
    if lanes is None:
        for cand in (1024, 512, 256, 128):
            if total % cand == 0:
                lanes = cand
                break
    m = total // lanes

    x_item = jnp.dtype(inputs.dtype).itemsize
    t_item = jnp.dtype(targets.dtype).itemsize
    # Sublane multiple covering both input dtypes (8 for 32-bit, 16 bf16, 32 int8).
    mult = max(8, 32 // x_item, 32 // t_item)
    budget_item = max(x_item, t_item)

    if m >= mult:
        br_cap = max(mult,
                     (target_block_bytes // (lanes * budget_item)) // mult * mult)
        br = max(mult, min(br_cap, (m // mult) * mult))
    else:
        br = m  # tiny array: single full-extent block

    acc_rows = 8 if br % 8 == 0 else br
    nblocks = pl.cdiv(m, br)
    n_par = n_cores if acc_rows % 8 == 0 else 1
    n_par = max(1, min(n_par, nblocks))
    bpc = pl.cdiv(nblocks, n_par)
    has_dead = nblocks != n_par * bpc
    ragged = (m % br) != 0
    last_block = nblocks - 1

    # First block index (in global block numbering) that needs row masking.
    if ragged:
        mask_from_block = last_block
    elif has_dead:
        mask_from_block = nblocks
    else:
        mask_from_block = None

    if has_dead:
        def in_map(c, i):
            return (jnp.minimum(c * bpc + i, last_block), 0)
    else:
        def in_map(c, i):
            return (c * bpc + i, 0)

    x2 = inputs.reshape(m, lanes)   # native dtype, no upcast in the wrapper
    t2 = targets.reshape(m, lanes)

    kernel = functools.partial(
        _focal_loss_kernel, m_rows=m, block_rows=br, blocks_per_core=bpc,
        acc_rows=acc_rows, mask_from_block=mask_from_block,
        binary_targets=bool(assume_binary_targets))

    partial_sums = pl.pallas_call(
        kernel,
        out_shape=jax.ShapeDtypeStruct((n_par * acc_rows, lanes), jnp.float32),
        grid_spec=pltpu.PrefetchScalarGridSpec(
            num_scalar_prefetch=0,
            grid=(n_par, bpc),
            in_specs=[pl.BlockSpec((br, lanes), in_map),
                      pl.BlockSpec((br, lanes), in_map)],
            out_specs=pl.BlockSpec((acc_rows, lanes), lambda c, i: (c, 0)),
        ),
        compiler_params=pltpu.CompilerParams(
            dimension_semantics=("parallel", "arbitrary"),
            vmem_limit_bytes=vmem_limit_bytes),
    )(x2, t2)

    return jnp.sum(partial_sums) / jnp.float32(total)


def _focal_loss_ref(inputs, targets):
    p = inputs.astype(jnp.float32)
    t = targets.astype(jnp.float32)
    log_p = jnp.maximum(jnp.log(p), _BCE_LOG_CLAMP)
    log_1mp = jnp.maximum(jnp.log(1.0 - p), _BCE_LOG_CLAMP)
    bce = -(t * log_p + (1.0 - t) * log_1mp)
    pt = jnp.exp(-bce)
    q = 1.0 - pt
    return jnp.mean(ALPHA * q * q * bce)


if __name__ == "__main__":
    key = jax.random.PRNGKey(0)
    k1, k2 = jax.random.split(key)

    # logits=False -> inputs are probabilities in (0, 1); targets in [0, 1].
    shape = (2, 4, 16, 16)
    inputs = jax.random.uniform(k1, shape, jnp.float32, minval=1e-3, maxval=1.0 - 1e-3)
    targets = (jax.random.uniform(k2, shape, jnp.float32) > 0.5).astype(jnp.float32)

    loss = focal_loss(inputs, targets)
    jax.block_until_ready(loss)
    ref = _focal_loss_ref(inputs, targets)
    assert jnp.allclose(loss, ref, rtol=1e-5, atol=1e-6), (loss, ref)

    # Larger shape exercising the multi-block / ragged-mask (and 2-core on v7x) path.
    shape2 = (2, 4, 48, 48)
    x2 = jax.random.uniform(k1, shape2, jnp.float32, minval=1e-3, maxval=1.0 - 1e-3)
    t2 = (jax.random.uniform(k2, shape2, jnp.float32) > 0.5).astype(jnp.float32)
    loss2 = focal_loss(x2, t2)
    jax.block_until_ready(loss2)
    ref2 = _focal_loss_ref(x2, t2)
    assert jnp.allclose(loss2, ref2, rtol=1e-5, atol=1e-6), (loss2, ref2)

    # Reduced-HBM-byte path: bf16 probabilities + int8 binary targets
    # (auto-enables the 1-log fast path).
    shape3 = (2, 4, 64, 64)
    x3 = jax.random.uniform(k1, shape3, jnp.float32,
                            minval=1e-3, maxval=1.0 - 1e-3).astype(jnp.bfloat16)
    t3 = (jax.random.uniform(k2, shape3, jnp.float32) > 0.5).astype(jnp.int8)
    loss3 = focal_loss(x3, t3)
    jax.block_until_ready(loss3)
    ref3 = _focal_loss_ref(x3.astype(jnp.float32), t3.astype(jnp.float32))
    assert jnp.allclose(loss3, ref3, rtol=1e-5, atol=1e-6), (loss3, ref3)

    print("KERNEL_OK")
</pallas_src>

<mosaic_0001>
module attributes {stable_mosaic.version = 11 : i64} {
  func.func @_focal_loss_kernel(%arg0: i32, %arg1: i32, %arg2: memref<8x256xf32, #tpu.memory_space<vmem>>, %arg3: memref<8x256xf32, #tpu.memory_space<vmem>>, %arg4: memref<8x256xf32, #tpu.memory_space<vmem>>) attributes {dimension_semantics = [#tpu.dimension_semantics<parallel>, #tpu.dimension_semantics<arbitrary>], iteration_bounds = array<i64: 1, 1>, scalar_prefetch = 0 : i64, scratch_operands = 0 : i64, tpu.core_type = #tpu.core_type<tc>, window_params = [{transform_indices = @transform_0, window_bounds = array<i64: 8, 256>}, {transform_indices = @transform_1, window_bounds = array<i64: 8, 256>}, {transform_indices = @transform_2, window_bounds = array<i64: 8, 256>}]} {
    %c0_i32 = arith.constant 0 : i32
    %0 = arith.cmpi eq, %arg1, %c0_i32 : i32
    %1 = arith.extui %0 : i1 to i32
    %c0_i32_0 = arith.constant 0 : i32
    %2 = arith.cmpi ne, %1, %c0_i32_0 : i32
    scf.if %2 {
      %cst_15 = arith.constant 0.000000e+00 : f32
      %32 = vector.broadcast %cst_15 : f32 to vector<8x256xf32>
      %c0_16 = arith.constant 0 : index
      %c0_17 = arith.constant 0 : index
      %33 = vector.load %arg4[%c0_16, %c0_17] : memref<8x256xf32, #tpu.memory_space<vmem>>, vector<8x256xf32>
      tpu.vector_store %arg4[%c0_16, %c0_17], %32 {strides = array<i32>} : memref<8x256xf32, #tpu.memory_space<vmem>>, vector<8x256xf32>,
    } else {
    }
    %c0 = arith.constant 0 : index
    %c0_1 = arith.constant 0 : index
    %3 = vector.load %arg2[%c0, %c0_1] : memref<8x256xf32, #tpu.memory_space<vmem>>, vector<8x256xf32>
    %c0_2 = arith.constant 0 : index
    %c0_3 = arith.constant 0 : index
    %4 = vector.load %arg3[%c0_2, %c0_3] : memref<8x256xf32, #tpu.memory_space<vmem>>, vector<8x256xf32>
    %5 = math.log %3 : vector<8x256xf32>
    %cst = arith.constant -1.000000e+02 : f32
    %6 = vector.broadcast %cst : f32 to vector<8x256xf32>
    %7 = arith.maximumf %5, %6 : vector<8x256xf32>
    %cst_4 = arith.constant 1.000000e+00 : f32
    %8 = vector.broadcast %cst_4 : f32 to vector<8x256xf32>
    %9 = arith.subf %8, %3 : vector<8x256xf32>
    %10 = math.log %9 : vector<8x256xf32>
    %cst_5 = arith.constant -1.000000e+02 : f32
    %11 = vector.broadcast %cst_5 : f32 to vector<8x256xf32>
    %12 = arith.maximumf %10, %11 : vector<8x256xf32>
    %13 = arith.mulf %4, %7 : vector<8x256xf32>
    %cst_6 = arith.constant 1.000000e+00 : f32
    %14 = vector.broadcast %cst_6 : f32 to vector<8x256xf32>
    %15 = arith.subf %14, %4 : vector<8x256xf32>
    %16 = arith.mulf %15, %12 : vector<8x256xf32>
    %17 = arith.addf %13, %16 : vector<8x256xf32>
    %cst_7 = arith.constant 0.000000e+00 : f32
    %18 = vector.broadcast %cst_7 : f32 to vector<8x256xf32>
    %19 = arith.subf %18, %17 : vector<8x256xf32>
    %cst_8 = arith.constant 0.000000e+00 : f32
    %20 = vector.broadcast %cst_8 : f32 to vector<8x256xf32>
    %21 = arith.subf %20, %19 : vector<8x256xf32>
    %22 = math.exp %21 : vector<8x256xf32>
    %cst_9 = arith.constant 1.000000e+00 : f32
    %23 = vector.broadcast %cst_9 : f32 to vector<8x256xf32>
    %24 = arith.subf %23, %22 : vector<8x256xf32>
    %25 = arith.mulf %24, %24 : vector<8x256xf32>
    %26 = arith.mulf %25, %19 : vector<8x256xf32>
    %c0_10 = arith.constant 0 : index
    %c0_11 = arith.constant 0 : index
    %27 = vector.load %arg4[%c0_10, %c0_11] : memref<8x256xf32, #tpu.memory_space<vmem>>, vector<8x256xf32>
    %28 = vector.shape_cast %26 : vector<8x256xf32> to vector<1x8x256xf32>
    %cst_12 = arith.constant dense<0.000000e+00> : vector<8x256xf32>
    %29 = vector.multi_reduction <add>, %28, %cst_12 [0] : vector<1x8x256xf32> to vector<8x256xf32>
    %30 = arith.addf %27, %29 : vector<8x256xf32>
    %c0_13 = arith.constant 0 : index
    %c0_14 = arith.constant 0 : index
    %31 = vector.load %arg4[%c0_13, %c0_14] : memref<8x256xf32, #tpu.memory_space<vmem>>, vector<8x256xf32>
    tpu.vector_store %arg4[%c0_13, %c0_14], %30 {strides = array<i32>} : memref<8x256xf32, #tpu.memory_space<vmem>>, vector<8x256xf32>,
    return
  }
  func.func @transform_0(%arg0: i32, %arg1: i32) -> (i32, i32) {
    %c1_i32 = arith.constant 1 : i32
    %0 = arith.muli %arg0, %c1_i32 : i32
    %1 = arith.addi %0, %arg1 : i32
    %c0_i32 = arith.constant 0 : i32
    %c0_i32_0 = arith.constant 0 : i32
    return %1, %c0_i32 : i32, i32
  }
  func.func @transform_1(%arg0: i32, %arg1: i32) -> (i32, i32) {
    %c1_i32 = arith.constant 1 : i32
    %0 = arith.muli %arg0, %c1_i32 : i32
    %1 = arith.addi %0, %arg1 : i32
    %c0_i32 = arith.constant 0 : i32
    %c0_i32_0 = arith.constant 0 : i32
    return %1, %c0_i32 : i32, i32
  }
  func.func @transform_2(%arg0: i32, %arg1: i32) -> (i32, i32) {
    %c0_i32 = arith.constant 0 : i32
    %c0_i32_0 = arith.constant 0 : i32
    return %arg0, %c0_i32 : i32, i32
  }
}

</mosaic_0001>

<llo_original>
// kernel: tpu_custom_call.1
$region0: #{tpu_custom_call.1}
  #allocation0 [shape = 'u32[]', space=smem, size = 0x4, offset = 0x4, fixed_abs, tag = 'smem constant byte address 0x4 - core index']
  #allocation1 [shape = 'u32[72,128]{1,0:T(1,128)}', space=vmem, size = 0x9000, scoped, tag = 'internal scratch']
  %s0 = inlined_call_operand.hbm [shape: f32[8,256], index: 0, kind: input, shape index: {}]
  %s1 = inlined_call_operand.hbm [shape: f32[8,256], index: 1, kind: input, shape index: {}]
  %s2 = inlined_call_operand.hbm [shape: f32[8,256], index: 2, kind: output, shape index: {}]
  %s3 = sld [smem:[#allocation0]]
  $region30: #{tpu_custom_call.1} parent=0
    _
  %s5 = ssub.s32 1, %s3
  %s6 = scalar_select 0, %s5, %s3
  $region1: #{tpu_custom_call.1} parent=0
    #allocation2 [shape = 'u8[8192]{0}', space=vmem, size = 0x2000, scoped, tag = 'input window, operand 0, single buffered']
    #allocation3 [shape = 's32[1]{0}', space=sflag, size = 0x4, scoped, tag = 'scoped memory for tpu_custom_call.1']
    #allocation4 [shape = 's32[1]{0}', space=sflag, size = 0x4, scoped, tag = 'scoped memory for tpu_custom_call.1']
    #allocation5 [shape = 'u8[8192]{0}', space=vmem, size = 0x2000, scoped, tag = 'input window, operand 1, single buffered']
    #allocation6 [shape = 's32[1]{0}', space=sflag, size = 0x4, scoped, tag = 'scoped memory for tpu_custom_call.1']
    #allocation7 [shape = 'u8[8192]{0}', space=vmem, size = 0x2000, scoped, tag = 'output window, operand 0, single buffered']
    %7 = vsyncpa [#allocation3], 0
    %8 = vsyncpa [#allocation6], 0
    %9 = vsyncpa [#allocation4], 0
    // Predicated region
    $region2: #{tpu_custom_call.1} parent=1 // pred_check
      _
    $region3: #{tpu_custom_call.1} parent=1 // pred_check_branch
      %11 = sbr.rel (0) target = $region5
    $region4: #{tpu_custom_call.1} parent=1 // pred_region
      %s12 = sadd.s32 0, 0
      %14 = vsyncadd [#allocation3], 0
      %s15 = smul.addr %s12, 2
      %s16 = smul.addr %s15, 8
      %s17 = scalar_lea.hbm %s0, %s16
      %s19 = sshll.u32 %s17, 4
      %s20 = int_to_ptr.hbm [resolvable:$true] %s19
      %s21 = sshll.u32 [#allocation2], 4
      %s22 = int_to_ptr.vmem [resolvable:$true] %s21
      %24 = dma.hbm_to_vmem [thread:$0]  %s20, 256, %s22, [#allocation3]
    $region5: #{tpu_custom_call.1} parent=1 // pred_fallthru
      _
    // Predicated region
    $region6: #{tpu_custom_call.1} parent=1 // pred_check
      _
    $region7: #{tpu_custom_call.1} parent=1 // pred_check_branch
      %26 = sbr.rel (0) target = $region9
    $region8: #{tpu_custom_call.1} parent=1 // pred_region
      %s27 = sadd.s32 0, 0
      %29 = vsyncadd [#allocation6], 0
      %s30 = smul.addr %s27, 2
      %s31 = smul.addr %s30, 8
      %s32 = scalar_lea.hbm %s1, %s31
      %s34 = sshll.u32 %s32, 4
      %s35 = int_to_ptr.hbm [resolvable:$true] %s34
      %s36 = sshll.u32 [#allocation5], 4
      %s37 = int_to_ptr.vmem [resolvable:$true] %s36
      %39 = dma.hbm_to_vmem [thread:$0]  %s35, 256, %s37, [#allocation6]
    $region9: #{tpu_custom_call.1} parent=1 // pred_fallthru
      _
    // Predicated region
    $region10: #{tpu_custom_call.1} parent=1 // pred_check
      _
    $region11: #{tpu_custom_call.1} parent=1 // pred_check_branch
      %41 = sbr.rel (0) target = $region13
    $region12: #{tpu_custom_call.1} parent=1 // pred_region
      %43 = dma.done [#allocation3], 256
    $region13: #{tpu_custom_call.1} parent=1 // pred_fallthru
      _
    // Predicated region
    $region14: #{tpu_custom_call.1} parent=1 // pred_check
      _
    $region15: #{tpu_custom_call.1} parent=1 // pred_check_branch
      %45 = sbr.rel (0) target = $region17
    $region16: #{tpu_custom_call.1} parent=1 // pred_region
      %47 = dma.done [#allocation6], 256
    $region17: #{tpu_custom_call.1} parent=1 // pred_fallthru
      _
    %s48 = sadd.s32 0, 0
    %s49 = sadd.s32 0, 0
    %p50 = scmp.eq.s32.totalorder 0, 0
    // Predicated region
    $region18: #{tpu_custom_call.1} parent=1 // pred_check
      %p51 = pneg %p50
    $region19: #{tpu_custom_call.1} parent=1 // pred_check_branch
      %53 = sbr.rel (%p51) target = $region21
    $region20: #{tpu_custom_call.1} parent=1 // pred_region
      %54 = vst [vmem:[#allocation7] sm:$0xff] 0.0
      %55 = vst [vmem:[#allocation7 + $0x8] sm:$0xff] 0.0
    $region21: #{tpu_custom_call.1} parent=1 // pred_fallthru
      _
    %v56 = vld [vmem:[#allocation2] sm:$0xff]
    %v57 = vld [vmem:[#allocation2 + $0x8] sm:$0xff]
    %v58 = vld [vmem:[#allocation5] sm:$0xff]
    %v59 = vld [vmem:[#allocation5 + $0x8] sm:$0xff]
    %v60 = vlog2.pop %v56
    %v61 = vmul.f32 %v60, 0.6931472
    %v62 = vlog2.pop %v57
    %v63 = vmul.f32 %v62, 0.6931472
    %v64 = vmax.f32 %v61, -100.0
    %v65 = vmax.f32 %v63, -100.0
    %v66 = vsub.f32 1.0, %v56
    %v67 = vsub.f32 1.0, %v57
    %v68 = vlog2.pop %v66
    %v69 = vmul.f32 %v68, 0.6931472
    %v70 = vlog2.pop %v67
    %v71 = vmul.f32 %v70, 0.6931472
    %v72 = vmax.f32 %v69, -100.0
    %v73 = vmax.f32 %v71, -100.0
    %v74 = vmul.f32 %v58, %v64
    %v75 = vmul.f32 %v59, %v65
    %v76 = vsub.f32 1.0, %v58
    %v77 = vsub.f32 1.0, %v59
    %v78 = vmul.f32 %v76, %v72
    %v79 = vmul.f32 %v77, %v73
    %v80 = vadd.f32 %v74, %v78
    %v81 = vadd.f32 %v75, %v79
    %v82 = vsub.f32 0.0, %v80
    %v83 = vsub.f32 0.0, %v81
    %v84 = vsub.f32 0.0, %v82
    %v85 = vsub.f32 0.0, %v83
    %v86 = vmul.f32 %v84, 1.442695
    %v87 = vpow.pop %v86
    %v88 = vmul.f32 %v85, 1.442695
    %v89 = vpow.pop %v88
    %v90 = vsub.f32 1.0, %v87
    %v91 = vsub.f32 1.0, %v89
    %v92 = vmul.f32 %v90, %v90
    %v93 = vmul.f32 %v91, %v91
    %v94 = vmul.f32 %v92, %v82
    %v95 = vmul.f32 %v93, %v83
    %v96 = vld [vmem:[#allocation7] sm:$0xff]
    %v97 = vld [vmem:[#allocation7 + $0x8] sm:$0xff]
    %v98 = vadd.f32 %v94, 0.0
    %v99 = vadd.f32 %v95, 0.0
    %v100 = vadd.f32 %v96, %v98
    %v101 = vadd.f32 %v97, %v99
    %102 = vst [vmem:[#allocation7] sm:$0xff] %v100
    %103 = vst [vmem:[#allocation7 + $0x8] sm:$0xff] %v101
    // Predicated region
    $region22: #{tpu_custom_call.1} parent=1 // pred_check
      _
    $region23: #{tpu_custom_call.1} parent=1 // pred_check_branch
      %105 = sbr.rel (0) target = $region25
    $region24: #{tpu_custom_call.1} parent=1 // pred_region
      %107 = vsyncadd [#allocation4], 0
      %s109 = sshll.u32 [#allocation7], 4
      %s110 = int_to_ptr.vmem [resolvable:$true] %s109
      %s111 = sshll.u32 %s2, 4
      %s112 = int_to_ptr.hbm [resolvable:$true] %s111
      %114 = dma.vmem_to_hbm [thread:$0]  %s110, 256, %s112, [#allocation4]
    $region25: #{tpu_custom_call.1} parent=1 // pred_fallthru
      _
    // Predicated region
    $region26: #{tpu_custom_call.1} parent=1 // pred_check
      _
    $region27: #{tpu_custom_call.1} parent=1 // pred_check_branch
      %116 = sbr.rel (0) target = $region29
    $region28: #{tpu_custom_call.1} parent=1 // pred_region
      %118 = dma.done [#allocation4], 256
    $region29: #{tpu_custom_call.1} parent=1 // pred_fallthru
      _
    %119 = vsyncpa [#allocation3], 1
    %120 = vsyncpa [#allocation6], 1
    %121 = vsyncpa [#allocation4], 1

</llo_original>
